<compile_context>
chip_gen: v5e
topology: v5e:2x2
jax: 0.10.0
libtpu: 0.0.40
codegen_flags: <defaults>
</compile_context>

<pallas_src>
import functools

import numpy as np
import jax
import jax.numpy as jnp
from jax.experimental import pallas as pl
from jax.experimental.pallas import tpu as pltpu

_LANE = 128


def _round_up(v, m):
    return ((v + m - 1) // m) * m


def _pick_tile(rows, hw, n_slabs, budget_bytes=12 << 20, max_tile=16384):
    """Lane-aligned (multiple-of-128) pixel-tile size.

    Budgeted so that `n_slabs` double-buffered f32 (rows, T) blocks stay well
    under the smallest default scoped-VMEM limit (v5e: 16 MiB) and v7x's 64 MiB
    physical VMEM, while keeping >= 2 grid steps for v7x megacore balance.
    """
    if hw <= _LANE:
        return hw
    per_col_bytes = 4 * rows * n_slabs * 2            # f32, double-buffered
    t = (budget_bytes // max(per_col_bytes, 1)) // _LANE * _LANE
    t = max(_LANE, min(t, max_tile))
    t = min(t, _round_up((hw + 1) // 2, _LANE))        # >= 2 grid steps when possible
    t = min(t, _round_up(hw, _LANE))
    return int(t)


# ----------------------------- blur kernel -----------------------------

def _blur_sep_kernel(x_ref, o_ref, pad_ref, *, g, H, W):
    """Separable depthwise 7x7 Gaussian blur of one (H, W) plane.

    The 3-wide zero halo is built in VMEM (no XLA-side jnp.pad -> no extra
    full-image HBM write + read). Horizontal taps are shifted window loads
    straight from the padded scratch ref; vertical taps are sublane slices.
    """
    pad_ref[...] = jnp.zeros_like(pad_ref)                 # (H+6, W+6) zeros
    pad_ref[pl.ds(3, H), pl.ds(3, W)] = x_ref[...][0, 0]   # interior = x
    # Horizontal pass: 7 shifted (H+6, W) window loads from the ref.
    hacc = g[0] * pad_ref[:, pl.ds(0, W)]
    for v in range(1, 7):
        hacc = hacc + g[v] * pad_ref[:, pl.ds(v, W)]
    # Vertical pass: 7 sublane-shifted slices.
    out = g[0] * hacc[0:H, :]
    for u in range(1, 7):
        out = out + g[u] * hacc[u:u + H, :]
    o_ref[...] = out[None, None, :, :]


def pallas_separable_blur(x, g):
    """'same'-padded depthwise 7x7 Gaussian blur, one (b, c) plane per grid step."""
    B, C, H, W = x.shape
    Hp, Wp = H + 6, W + 6
    kernel = functools.partial(_blur_sep_kernel, g=g, H=H, W=W)
    # Working set: in/out blocks (double-buffered) + padded scratch + hacc.
    needed = 4 * (4 * H * W + Hp * Wp + Hp * W) + (2 << 20)
    vmem_limit = int(min(max(needed, 32 << 20), 64 << 20))
    # TODO(synk): for very large planes (H, W >~ 1024) tile H into halo'd row
    # strips (third grid axis + manual halo DMA) instead of one plane per step.
    return pl.pallas_call(
        kernel,
        out_shape=jax.ShapeDtypeStruct((B, C, H, W), jnp.float32),
        grid=(B, C),
        in_specs=[pl.BlockSpec((1, 1, H, W), lambda b, c: (b, c, 0, 0))],
        out_specs=pl.BlockSpec((1, 1, H, W), lambda b, c: (b, c, 0, 0)),
        scratch_shapes=[pltpu.VMEM((Hp, Wp), jnp.float32)],
        compiler_params=pltpu.CompilerParams(
            dimension_semantics=("parallel", "parallel"),
            vmem_limit_bytes=vmem_limit),
    )(x.astype(jnp.float32))


# ------------------- fused elementwise-chain kernel -------------------

def pallas_elementwise_chain(x, ops):
    """Apply a chain of elementwise transforms in ONE pass over the image.

    ops: sequence of op descriptors, applied in order:
      ("affine",     scale (B,3,1), offset (B,3,1))  -> clip(x*scale + offset, 0, 1)
      ("noise",      std_signed (1,) f32, seed (1,) i32)
                                                     -> clip(x + std*N(0,1), 0, 1)
      ("noise_slab", slab (B,3,H,W))                 -> clip(x + slab, 0, 1)
      ("sat",        s (1,) f32)                     -> x + s*(lum(x) - x)
    Chains without "sat" run on a sublane-packed (B*C, H*W) view.
    """
    if not ops:
        return x
    B, C, H, W = x.shape
    HW = H * W
    needs_channels = any(op[0] == "sat" for op in ops)
    if needs_channels:
        assert C == 3, "saturation expects 3-channel input"
        vshape, pshape = (B, C, HW), (B, C, 1)
    else:
        vshape, pshape = (B * C, HW), (B * C, 1)
    nd = len(vshape)
    rows = B * C
    x2 = x.astype(jnp.float32).reshape(vshape)

    param_spec = pl.BlockSpec(pshape, lambda i, _nd=nd: (0,) * _nd)
    smem_spec = pl.BlockSpec(memory_space=pltpu.MemorySpace.SMEM)
    _SLAB = object()                       # placeholder: full-size streamed slab

    operands, op_specs, appliers = [], [], []
    n_streamed = 2                         # x + out
    for idx, op in enumerate(ops):
        kind = op[0]
        if kind == "affine":
            operands += [op[1].astype(jnp.float32).reshape(pshape),
                         op[2].astype(jnp.float32).reshape(pshape)]
            op_specs += [param_spec, param_spec]

            def _affine(xb, refs):
                s_ref, o_ref = refs
                return jnp.clip(xb * s_ref[...] + o_ref[...], 0.0, 1.0)
            appliers.append((2, _affine))
        elif kind == "noise":
            operands += [jnp.asarray(op[2], jnp.int32).reshape(1),
                         jnp.asarray(op[1], jnp.float32).reshape(1)]
            op_specs += [smem_spec, smem_spec]

            def _noise(xb, refs, _salt=idx):
                seed_ref, std_ref = refs
                # Hash (seed, tile, op index) to decorrelate per-tile streams.
                # TODO(synk): noise still depends on the tile size T; use
                # pltpu.sample_block/to_pallas_key for grid-invariant sampling.
                pltpu.prng_seed(seed_ref[0]
                                + pl.program_id(0) * jnp.int32(1640531527)
                                + jnp.int32(_salt * 40503))
                n = pltpu.stateful_normal(xb.shape, jnp.float32)
                return jnp.clip(xb + std_ref[0] * n, 0.0, 1.0)
            appliers.append((2, _noise))
        elif kind == "noise_slab":
            operands.append(op[1].astype(jnp.float32).reshape(vshape))
            op_specs.append(_SLAB)
            n_streamed += 1

            def _noise_slab(xb, refs):
                (n_ref,) = refs
                return jnp.clip(xb + n_ref[...], 0.0, 1.0)
            appliers.append((1, _noise_slab))
        elif kind == "sat":
            operands.append(jnp.asarray(op[1], jnp.float32).reshape(1))
            op_specs.append(smem_spec)

            def _sat(xb, refs):
                (s_ref,) = refs
                lum = (0.3 * xb[:, 0, :] + 0.6 * xb[:, 1, :]
                       + 0.1 * xb[:, 2, :]) * (1.0 / 3.0)
                return xb + s_ref[0] * (lum[:, None, :] - xb)
            appliers.append((1, _sat))
        else:
            raise ValueError(f"unknown elementwise op: {kind}")

    T = _pick_tile(rows, HW, n_streamed)
    if needs_channels:
        slab_spec = pl.BlockSpec((B, C, T), lambda i: (0, 0, i))
    else:
        slab_spec = pl.BlockSpec((B * C, T), lambda i: (0, i))
    in_specs = [slab_spec if s is _SLAB else s for s in op_specs] + [slab_spec]

    def kernel(*refs):
        op_refs, x_ref, o_ref = refs[:-2], refs[-2], refs[-1]
        xb = x_ref[...]
        pos = 0
        for n_refs, fn in appliers:
            xb = fn(xb, op_refs[pos:pos + n_refs])
            pos += n_refs
        o_ref[...] = xb

    out = pl.pallas_call(
        kernel,
        out_shape=jax.ShapeDtypeStruct(vshape, jnp.float32),
        grid=(pl.cdiv(HW, T),),
        in_specs=in_specs,
        out_specs=slab_spec,
        compiler_params=pltpu.CompilerParams(
            dimension_semantics=("parallel",)),
    )(*operands, x2)
    return out.reshape(B, C, H, W)


# ------------------- in-kernel RNG availability probe ----------------------

_STATEFUL_RNG_OK = None


def _stateful_rng_available():
    """Probe once whether pltpu.prng_seed + pltpu.stateful_normal lower/run."""
    global _STATEFUL_RNG_OK
    if _STATEFUL_RNG_OK is None:
        ok = hasattr(pltpu, "stateful_normal") and hasattr(pltpu, "prng_seed")
        if ok:
            try:
                x = jnp.zeros((1, 3, 8, 16), jnp.float32)         # HW = 128
                op = ("noise", jnp.zeros((1,), jnp.float32),
                      jnp.zeros((1,), jnp.int32))
                y = pallas_elementwise_chain(x, [op])
                jax.block_until_ready(y)
            except Exception:
                ok = False
        _STATEFUL_RNG_OK = ok
    return _STATEFUL_RNG_OK


# ----------------------------- TransformNet -----------------------------

def _gaussian_sep_weights(n=7, sigma=2.0):
    # Normalized 1-D Gaussian; outer(g, g) equals the normalized 2-D kernel.
    ax = np.arange(n, dtype=np.float64) - (n - 1) / 2.0
    g = np.exp(-(ax ** 2) / (2.0 * sigma ** 2))
    g /= g.sum()
    return tuple(float(v) for v in g)


class TransformNetPallas:
    _NAMES = ["blur", "noise", "de_noise", "brightness", "jpeg", "saturation"]

    def __init__(self, rnd_bri=0.3, rnd_hue=0.1, do_jpeg=False, jpeg_quality=50,
                 rnd_noise=0.02, rnd_sat=1.0, rnd_trans=0.1,
                 contrast=(0.5, 1.5), ramp=10000, imagenetc_level=0):
        self.rnd_bri = rnd_bri
        self.rnd_hue = rnd_hue
        self.jpeg_quality = jpeg_quality
        self.rnd_noise = rnd_noise
        self.rnd_sat = rnd_sat
        self.rnd_trans = rnd_trans
        self.contrast_low, self.contrast_high = contrast
        self.do_jpeg = do_jpeg
        self.ramp = ramp
        self.step0 = 0
        self._g = _gaussian_sep_weights(7, 2.0)
        self._use_inkernel_rng = _stateful_rng_available()
        # Host RNG for torch.rand-style host control flow (no device syncs).
        self._host_rng = np.random.default_rng(0)
        # NOTE: images are kept f32 end-to-end for fidelity; a bf16 carry
        # between transforms would ~halve HBM traffic at small precision cost.

    def _ramp(self, global_step):
        return float(np.min([(global_step - self.step0) / self.ramp, 1.0]))

    # --- op descriptor builders (tensor randomness from `key`) ---

    def _noise_op(self, x, ramp_val, key, sign):
        k1, k2 = jax.random.split(key)
        std = jax.random.uniform(k1) * ramp_val * self.rnd_noise
        if self._use_inkernel_rng:
            seed = jax.random.randint(k2, (1,), 0, jnp.iinfo(jnp.int32).max,
                                      dtype=jnp.int32)
            return ("noise", jnp.reshape(sign * std, (1,)).astype(jnp.float32),
                    seed)
        # Fallback: noise slab from XLA, fused add+clamp in the chain kernel.
        slab = (sign * std) * jax.random.normal(k2, x.shape, jnp.float32)
        return ("noise_slab", slab)

    def _brightness_op(self, x, ramp_val, key):
        B = x.shape[0]
        k1, k2, k3 = jax.random.split(key, 3)
        rnd_bri = ramp_val * self.rnd_bri
        rnd_hue = ramp_val * self.rnd_hue
        # util.get_rnd_brightness_torch: per-channel hue + per-image brightness.
        hue = jax.random.uniform(k1, (B, 3, 1), jnp.float32,
                                 minval=-rnd_hue, maxval=rnd_hue)
        bri = jax.random.uniform(k2, (B, 1, 1), jnp.float32,
                                 minval=-rnd_bri, maxval=rnd_bri)
        offset = hue + bri
        c_lo = 1.0 - (1.0 - self.contrast_low) * ramp_val
        c_hi = 1.0 + (self.contrast_high - 1.0) * ramp_val
        contrast = jax.random.uniform(k3, (B, 1, 1), jnp.float32,
                                      minval=c_lo, maxval=c_hi)
        scale = jnp.broadcast_to(contrast, (B, 3, 1))
        return ("affine", scale, offset)

    def _saturation_op(self, ramp_val, key):
        s = jax.random.uniform(key) * ramp_val * self.rnd_sat
        return ("sat", jnp.reshape(s, (1,)).astype(jnp.float32))

    def _ops_for(self, name, x, ramp_val, key):
        if name == "jpeg":
            # do_jpeg defaults to False -> identity (matches module default).
            # TODO(synk): util.jpeg_compress_decompress (DCT quant/dequant) for
            # do_jpeg=True has no clean single-kernel equivalent here.
            return []
        if name == "noise":
            return [self._noise_op(x, ramp_val, key, 1.0)]
        if name == "de_noise":
            return [self._noise_op(x, ramp_val, key, -1.0)]
        if name == "brightness":
            return [self._brightness_op(x, ramp_val, key)]
        if name == "saturation":
            return [self._saturation_op(ramp_val, key)]
        raise ValueError(name)

    # --- public transforms (each takes (x, ramp_val, key)) ---

    def blur(self, x, ramp_val, key):
        # TODO(synk): util.random_blur_kernel's host-side random kernel-type
        # selection (identity / gaussian / line) is replaced by a fixed Gaussian.
        return pallas_separable_blur(x, self._g)

    def noise(self, x, ramp_val, key):
        return pallas_elementwise_chain(x, self._ops_for("noise", x, ramp_val, key))

    def de_noise(self, x, ramp_val, key):
        return pallas_elementwise_chain(x, self._ops_for("de_noise", x, ramp_val, key))

    def brightness(self, x, ramp_val, key):
        return pallas_elementwise_chain(x, self._ops_for("brightness", x, ramp_val, key))

    def saturation(self, x, ramp_val, key):
        return pallas_elementwise_chain(x, self._ops_for("saturation", x, ramp_val, key))

    def jpeg(self, x, ramp_val, key):
        return x

    # --- forward ---

    def forward(self, x, global_step, key, p=0.9):
        # Host RNG for the probability gate + transform selection (mirrors the
        # torch.rand-driven Python control flow); tensor randomness from `key`.
        if self._host_rng.random() >= p:
            return x
        ramp_val = self._ramp(global_step)
        ra = self._host_rng.integers(0, 6, size=2)
        while int(ra[0]) == int(ra[1]):
            ra = self._host_rng.integers(0, 6, size=2)
        sel = [self._NAMES[int(ra[0])], self._NAMES[int(ra[1])]]
        k1, k2 = jax.random.split(key)
        keys = [k1, k2]
        if "blur" not in sel:
            # Both transforms are elementwise: fuse into ONE pallas_call
            # (one image read + one write instead of two of each).
            ops = (self._ops_for(sel[0], x, ramp_val, k1)
                   + self._ops_for(sel[1], x, ramp_val, k2))
            return pallas_elementwise_chain(x, ops)
        for name, kk in zip(sel, keys):
            if name == "blur":
                x = self.blur(x, ramp_val, kk)
            else:
                x = pallas_elementwise_chain(x, self._ops_for(name, x, ramp_val, kk))
        return x


# ----------------------------- demo -----------------------------

if __name__ == "__main__":
    key = jax.random.PRNGKey(0)
    k_x, k_fwd, k_b, k_n, k_dn, k_br, k_s = jax.random.split(key, 7)

    B, C, H, W = 2, 3, 16, 16
    x = jax.random.uniform(k_x, (B, C, H, W), jnp.float32)

    net = TransformNetPallas()
    global_step = 5000
    ramp_val = net._ramp(global_step)

    # Full forward (two randomly chosen transforms, as in the PyTorch module).
    y = net.forward(x, global_step, k_fwd, p=0.9)

    # Exercise every Pallas-backed transform path once, plus the fused chain.
    outs = [
        y,
        net.blur(x, ramp_val, k_b),
        net.noise(x, ramp_val, k_n),
        net.de_noise(x, ramp_val, k_dn),
        net.brightness(x, ramp_val, k_br),
        net.saturation(x, ramp_val, k_s),
        net.jpeg(x, ramp_val, k_s),
        pallas_elementwise_chain(x, [net._brightness_op(x, ramp_val, k_br),
                                     net._saturation_op(ramp_val, k_s)]),
        pallas_elementwise_chain(x, [net._noise_op(x, ramp_val, k_n, 1.0),
                                     net._brightness_op(x, ramp_val, k_br)]),
    ]
    for o in outs:
        o = jax.block_until_ready(o)
        assert o.shape == x.shape and o.dtype == jnp.float32

    print("KERNEL_OK")
</pallas_src>

<mosaic_0001>
module attributes {stable_mosaic.version = 11 : i64} {
  func.func @kernel(%arg0: i32, %arg1: memref<1xi32, #tpu.memory_space<smem>>, %arg2: memref<1xf32, #tpu.memory_space<smem>>, %arg3: memref<3x128xf32, #tpu.memory_space<vmem>>, %arg4: memref<3x128xf32, #tpu.memory_space<vmem>>) attributes {dimension_semantics = [#tpu.dimension_semantics<parallel>], iteration_bounds = array<i64: 1>, scalar_prefetch = 0 : i64, scratch_operands = 0 : i64, tpu.core_type = #tpu.core_type<tc>, window_params = [{transform_indices = @transform_0, window_bounds = array<i64: 1>}, {transform_indices = @transform_1, window_bounds = array<i64: 1>}, {transform_indices = @transform_2, window_bounds = array<i64: 3, 128>}, {transform_indices = @transform_3, window_bounds = array<i64: 3, 128>}]} {
    %c0 = arith.constant 0 : index
    %c0_0 = arith.constant 0 : index
    %0 = vector.load %arg3[%c0, %c0_0] : memref<3x128xf32, #tpu.memory_space<vmem>>, vector<3x128xf32>
    %c0_1 = arith.constant 0 : index
    %1 = memref.load %arg1[%c0_1] : memref<1xi32, #tpu.memory_space<smem>>
    %c1640531527_i32 = arith.constant 1640531527 : i32
    %2 = arith.muli %arg0, %c1640531527_i32 : i32
    %3 = arith.addi %1, %2 : i32
    %c0_i32 = arith.constant 0 : i32
    %4 = arith.addi %3, %c0_i32 : i32
    "tpu.prng_set_seed_32"(%4) : (i32) -> ()
    %c0_i32_2 = arith.constant 0 : i32
    %c0_i32_3 = arith.constant 0 : i32
    %cst = arith.constant -0.99999994 : f32
    %cst_4 = arith.constant 1.000000e+00 : f32
    %5 = vector.broadcast %cst : f32 to vector<1x1xf32>
    %6 = vector.broadcast %cst_4 : f32 to vector<1x1xf32>
    %7 = "tpu.prng_random_bits"() : () -> vector<3x128xi32>
    %c9_i32 = arith.constant 9 : i32
    %8 = vector.broadcast %c9_i32 : i32 to vector<3x128xi32>
    %9 = arith.shrui %7, %8 : vector<3x128xi32>
    %c1065353216_i32 = arith.constant 1065353216 : i32
    %10 = vector.broadcast %c1065353216_i32 : i32 to vector<3x128xi32>
    %11 = arith.ori %9, %10 : vector<3x128xi32>
    %12 = tpu.bitcast %11 : vector<3x128xi32> -> vector<3x128xf32>
    %cst_5 = arith.constant 1.000000e+00 : f32
    %13 = vector.broadcast %cst_5 : f32 to vector<3x128xf32>
    %14 = arith.subf %12, %13 : vector<3x128xf32>
    %15 = arith.subf %6, %5 : vector<1x1xf32>
    %16 = vector.broadcast %15 : vector<1x1xf32> to vector<3x128xf32>
    %17 = arith.mulf %14, %16 : vector<3x128xf32>
    %18 = vector.broadcast %5 : vector<1x1xf32> to vector<3x128xf32>
    %19 = arith.addf %17, %18 : vector<3x128xf32>
    %20 = vector.broadcast %5 : vector<1x1xf32> to vector<3x128xf32>
    %21 = arith.maximumf %20, %19 : vector<3x128xf32>
    %cst_6 = arith.constant 0.000000e+00 : f32
    %22 = vector.broadcast %cst_6 : f32 to vector<3x128xf32>
    %23 = arith.subf %22, %21 : vector<3x128xf32>
    %24 = arith.mulf %21, %23 : vector<3x128xf32>
    %25 = math.log1p %24 : vector<3x128xf32>
    %cst_7 = arith.constant 0.000000e+00 : f32
    %26 = vector.broadcast %cst_7 : f32 to vector<3x128xf32>
    %27 = arith.subf %26, %25 : vector<3x128xf32>
    %cst_8 = arith.constant 5.000000e+00 : f32
    %28 = vector.broadcast %cst_8 : f32 to vector<3x128xf32>
    %29 = arith.cmpf olt, %27, %28 : vector<3x128xf32>
    %cst_9 = arith.constant 2.500000e+00 : f32
    %30 = vector.broadcast %cst_9 : f32 to vector<3x128xf32>
    %31 = arith.subf %27, %30 : vector<3x128xf32>
    %32 = math.sqrt %27 : vector<3x128xf32>
    %cst_10 = arith.constant 3.000000e+00 : f32
    %33 = vector.broadcast %cst_10 : f32 to vector<3x128xf32>
    %34 = arith.subf %32, %33 : vector<3x128xf32>
    %35 = arith.select %29, %31, %34 : vector<3x128xi1>, vector<3x128xf32>
    %cst_11 = arith.constant 2.81022636E-8 : f32
    %cst_12 = arith.constant -2.00214257E-4 : f32
    %36 = vector.broadcast %cst_11 : f32 to vector<3x128xf32>
    %37 = vector.broadcast %cst_12 : f32 to vector<3x128xf32>
    %38 = arith.select %29, %36, %37 : vector<3x128xi1>, vector<3x128xf32>
    %cst_13 = arith.constant 3.43273939E-7 : f32
    %cst_14 = arith.constant 1.00950558E-4 : f32
    %39 = vector.broadcast %cst_13 : f32 to vector<3x128xf32>
    %40 = vector.broadcast %cst_14 : f32 to vector<3x128xf32>
    %41 = arith.select %29, %39, %40 : vector<3x128xi1>, vector<3x128xf32>
    %42 = arith.mulf %38, %35 : vector<3x128xf32>
    %43 = arith.addf %41, %42 : vector<3x128xf32>
    %cst_15 = arith.constant -3.5233877E-6 : f32
    %cst_16 = arith.constant 0.00134934322 : f32
    %44 = vector.broadcast %cst_15 : f32 to vector<3x128xf32>
    %45 = vector.broadcast %cst_16 : f32 to vector<3x128xf32>
    %46 = arith.select %29, %44, %45 : vector<3x128xi1>, vector<3x128xf32>
    %47 = arith.mulf %43, %35 : vector<3x128xf32>
    %48 = arith.addf %46, %47 : vector<3x128xf32>
    %cst_17 = arith.constant -4.39150654E-6 : f32
    %cst_18 = arith.constant -0.00367342844 : f32
    %49 = vector.broadcast %cst_17 : f32 to vector<3x128xf32>
    %50 = vector.broadcast %cst_18 : f32 to vector<3x128xf32>
    %51 = arith.select %29, %49, %50 : vector<3x128xi1>, vector<3x128xf32>
    %52 = arith.mulf %48, %35 : vector<3x128xf32>
    %53 = arith.addf %51, %52 : vector<3x128xf32>
    %cst_19 = arith.constant 2.1858087E-4 : f32
    %cst_20 = arith.constant 0.00573950773 : f32
    %54 = vector.broadcast %cst_19 : f32 to vector<3x128xf32>
    %55 = vector.broadcast %cst_20 : f32 to vector<3x128xf32>
    %56 = arith.select %29, %54, %55 : vector<3x128xi1>, vector<3x128xf32>
    %57 = arith.mulf %53, %35 : vector<3x128xf32>
    %58 = arith.addf %56, %57 : vector<3x128xf32>
    %cst_21 = arith.constant -0.00125372503 : f32
    %cst_22 = arith.constant -0.0076224613 : f32
    %59 = vector.broadcast %cst_21 : f32 to vector<3x128xf32>
    %60 = vector.broadcast %cst_22 : f32 to vector<3x128xf32>
    %61 = arith.select %29, %59, %60 : vector<3x128xi1>, vector<3x128xf32>
    %62 = arith.mulf %58, %35 : vector<3x128xf32>
    %63 = arith.addf %61, %62 : vector<3x128xf32>
    %cst_23 = arith.constant -0.00417768164 : f32
    %cst_24 = arith.constant 0.00943887047 : f32
    %64 = vector.broadcast %cst_23 : f32 to vector<3x128xf32>
    %65 = vector.broadcast %cst_24 : f32 to vector<3x128xf32>
    %66 = arith.select %29, %64, %65 : vector<3x128xi1>, vector<3x128xf32>
    %67 = arith.mulf %63, %35 : vector<3x128xf32>
    %68 = arith.addf %66, %67 : vector<3x128xf32>
    %cst_25 = arith.constant 0.246640727 : f32
    %cst_26 = arith.constant 1.00167406 : f32
    %69 = vector.broadcast %cst_25 : f32 to vector<3x128xf32>
    %70 = vector.broadcast %cst_26 : f32 to vector<3x128xf32>
    %71 = arith.select %29, %69, %70 : vector<3x128xi1>, vector<3x128xf32>
    %72 = arith.mulf %68, %35 : vector<3x128xf32>
    %73 = arith.addf %71, %72 : vector<3x128xf32>
    %cst_27 = arith.constant 1.50140941 : f32
    %cst_28 = arith.constant 2.83297682 : f32
    %74 = vector.broadcast %cst_27 : f32 to vector<3x128xf32>
    %75 = vector.broadcast %cst_28 : f32 to vector<3x128xf32>
    %76 = arith.select %29, %74, %75 : vector<3x128xi1>, vector<3x128xf32>
    %77 = arith.mulf %73, %35 : vector<3x128xf32>
    %78 = arith.addf %76, %77 : vector<3x128xf32>
    %79 = math.absf %21 : vector<3x128xf32>
    %cst_29 = arith.constant 1.000000e+00 : f32
    %80 = vector.broadcast %cst_29 : f32 to vector<3x128xf32>
    %81 = arith.cmpf oeq, %79, %80 : vector<3x128xf32>
    %cst_30 = arith.constant 0x7F800000 : f32
    %82 = vector.broadcast %cst_30 : f32 to vector<3x128xf32>
    %83 = arith.mulf %82, %21 : vector<3x128xf32>
    %84 = arith.mulf %78, %21 : vector<3x128xf32>
    %85 = arith.select %81, %83, %84 : vector<3x128xi1>, vector<3x128xf32>
    %cst_31 = arith.constant 1.41421354 : f32
    %86 = vector.broadcast %cst_31 : f32 to vector<3x128xf32>
    %87 = arith.mulf %86, %85 : vector<3x128xf32>
    %c0_32 = arith.constant 0 : index
    %88 = memref.load %arg2[%c0_32] : memref<1xf32, #tpu.memory_space<smem>>
    %89 = vector.broadcast %88 : f32 to vector<3x128xf32>
    %90 = arith.mulf %89, %87 : vector<3x128xf32>
    %91 = arith.addf %0, %90 : vector<3x128xf32>
    %cst_33 = arith.constant 0.000000e+00 : f32
    %cst_34 = arith.constant 1.000000e+00 : f32
    %92 = vector.broadcast %cst_33 : f32 to vector<3x128xf32>
    %93 = arith.maximumf %92, %91 : vector<3x128xf32>
    %94 = vector.broadcast %cst_34 : f32 to vector<3x128xf32>
    %95 = arith.minimumf %94, %93 : vector<3x128xf32>
    %c0_35 = arith.constant 0 : index
    %c0_36 = arith.constant 0 : index
    %96 = vector.load %arg4[%c0_35, %c0_36] : memref<3x128xf32, #tpu.memory_space<vmem>>, vector<3x128xf32>
    tpu.vector_store %arg4[%c0_35, %c0_36], %95 {strides = array<i32>} : memref<3x128xf32, #tpu.memory_space<vmem>>, vector<3x128xf32>,
    return
  }
  func.func @transform_0(%arg0: i32) -> i32 {
    %c0_i32 = arith.constant 0 : i32
    %c0_i32_0 = arith.constant 0 : i32
    return %c0_i32 : i32
  }
  func.func @transform_1(%arg0: i32) -> i32 {
    %c0_i32 = arith.constant 0 : i32
    %c0_i32_0 = arith.constant 0 : i32
    return %c0_i32 : i32
  }
  func.func @transform_2(%arg0: i32) -> (i32, i32) {
    %c0_i32 = arith.constant 0 : i32
    %c0_i32_0 = arith.constant 0 : i32
    return %c0_i32, %arg0 : i32, i32
  }
  func.func @transform_3(%arg0: i32) -> (i32, i32) {
    %c0_i32 = arith.constant 0 : i32
    %c0_i32_0 = arith.constant 0 : i32
    return %c0_i32, %arg0 : i32, i32
  }
}

module attributes {stable_mosaic.version = 11 : i64} {
  func.func @kernel(%arg0: i32, %arg1: memref<6x1xf32, #tpu.memory_space<vmem>>, %arg2: memref<6x1xf32, #tpu.memory_space<vmem>>, %arg3: memref<6x128xf32, #tpu.memory_space<vmem>>, %arg4: memref<6x128xf32, #tpu.memory_space<vmem>>, %arg5: memref<6x128xf32, #tpu.memory_space<vmem>>) attributes {dimension_semantics = [#tpu.dimension_semantics<parallel>], iteration_bounds = array<i64: 2>, scalar_prefetch = 0 : i64, scratch_operands = 0 : i64, tpu.core_type = #tpu.core_type<tc>, window_params = [{pipeline_mode = #tpu.pipeline_mode<synchronous>, transform_indices = @transform_0, window_bounds = array<i64: 6, 1>}, {pipeline_mode = #tpu.pipeline_mode<synchronous>, transform_indices = @transform_1, window_bounds = array<i64: 6, 1>}, {transform_indices = @transform_2, window_bounds = array<i64: 6, 128>}, {transform_indices = @transform_3, window_bounds = array<i64: 6, 128>}, {transform_indices = @transform_4, window_bounds = array<i64: 6, 128>}]} {
    %c0 = arith.constant 0 : index
    %c0_0 = arith.constant 0 : index
    %0 = vector.load %arg4[%c0, %c0_0] : memref<6x128xf32, #tpu.memory_space<vmem>>, vector<6x128xf32>
    %c0_1 = arith.constant 0 : index
    %c0_2 = arith.constant 0 : index
    %1 = vector.load %arg1[%c0_1, %c0_2] : memref<6x1xf32, #tpu.memory_space<vmem>>, vector<6x1xf32>
    %2 = vector.broadcast %1 : vector<6x1xf32> to vector<6x128xf32>
    %3 = arith.mulf %0, %2 : vector<6x128xf32>
    %c0_3 = arith.constant 0 : index
    %c0_4 = arith.constant 0 : index
    %4 = vector.load %arg2[%c0_3, %c0_4] : memref<6x1xf32, #tpu.memory_space<vmem>>, vector<6x1xf32>
    %5 = vector.broadcast %4 : vector<6x1xf32> to vector<6x128xf32>
    %6 = arith.addf %3, %5 : vector<6x128xf32>
    %cst = arith.constant 0.000000e+00 : f32
    %cst_5 = arith.constant 1.000000e+00 : f32
    %7 = vector.broadcast %cst : f32 to vector<6x128xf32>
    %8 = arith.maximumf %7, %6 : vector<6x128xf32>
    %9 = vector.broadcast %cst_5 : f32 to vector<6x128xf32>
    %10 = arith.minimumf %9, %8 : vector<6x128xf32>
    %c0_6 = arith.constant 0 : index
    %c0_7 = arith.constant 0 : index
    %11 = vector.load %arg3[%c0_6, %c0_7] : memref<6x128xf32, #tpu.memory_space<vmem>>, vector<6x128xf32>
    %12 = arith.addf %10, %11 : vector<6x128xf32>
    %cst_8 = arith.constant 0.000000e+00 : f32
    %cst_9 = arith.constant 1.000000e+00 : f32
    %13 = vector.broadcast %cst_8 : f32 to vector<6x128xf32>
    %14 = arith.maximumf %13, %12 : vector<6x128xf32>
    %15 = vector.broadcast %cst_9 : f32 to vector<6x128xf32>
    %16 = arith.minimumf %15, %14 : vector<6x128xf32>
    %c0_10 = arith.constant 0 : index
    %c0_11 = arith.constant 0 : index
    %17 = vector.load %arg5[%c0_10, %c0_11] : memref<6x128xf32, #tpu.memory_space<vmem>>, vector<6x128xf32>
    tpu.vector_store %arg5[%c0_10, %c0_11], %16 {strides = array<i32>} : memref<6x128xf32, #tpu.memory_space<vmem>>, vector<6x128xf32>,
    return
  }
  func.func @transform_0(%arg0: i32) -> (i32, i32) {
    %c0_i32 = arith.constant 0 : i32
    %c0_i32_0 = arith.constant 0 : i32
    %c0_i32_1 = arith.constant 0 : i32
    return %c0_i32, %c0_i32_0 : i32, i32
  }
  func.func @transform_1(%arg0: i32) -> (i32, i32) {
    %c0_i32 = arith.constant 0 : i32
    %c0_i32_0 = arith.constant 0 : i32
    %c0_i32_1 = arith.constant 0 : i32
    return %c0_i32, %c0_i32_0 : i32, i32
  }
  func.func @transform_2(%arg0: i32) -> (i32, i32) {
    %c0_i32 = arith.constant 0 : i32
    %c0_i32_0 = arith.constant 0 : i32
    return %c0_i32, %arg0 : i32, i32
  }
  func.func @transform_3(%arg0: i32) -> (i32, i32) {
    %c0_i32 = arith.constant 0 : i32
    %c0_i32_0 = arith.constant 0 : i32
    return %c0_i32, %arg0 : i32, i32
  }
  func.func @transform_4(%arg0: i32) -> (i32, i32) {
    %c0_i32 = arith.constant 0 : i32
    %c0_i32_0 = arith.constant 0 : i32
    return %c0_i32, %arg0 : i32, i32
  }
}

</mosaic_0001>

<llo_original>
// kernel: tpu_custom_call.1
$region0: #{tpu_custom_call.1}
  #allocation0 [shape = 'u32[]', space=smem, size = 0x4, offset = 0x4, fixed_abs, tag = 'smem constant byte address 0x4 - core index']
  #allocation1 [shape = 'u32[72,128]{1,0:T(1,128)}', space=vmem, size = 0x9000, scoped, tag = 'internal scratch']
  #allocation2 [shape = 's32[1]{0:T(128)S(6)}', space=smem, size = 0x200, scoped, tag = 'scoped memory for tpu_custom_call.1']
  #allocation3 [shape = 'f32[1]{0:T(128)S(6)}', space=smem, size = 0x200, scoped, tag = 'scoped memory for tpu_custom_call.1']
  %s0 = inlined_call_operand.<no memory space> [shape: s32[1], index: 0, kind: input, shape index: {}]
  %s1 = inlined_call_operand.<no memory space> [shape: f32[1], index: 1, kind: input, shape index: {}]
  %s2 = inlined_call_operand.vmem [shape: f32[3,128], index: 2, kind: input, shape index: {}]
  %s3 = inlined_call_operand.hbm [shape: f32[3,128], index: 3, kind: output, shape index: {}]
  %s4 = sld [smem:[#allocation0]]
  $region22: #{tpu_custom_call.1} parent=0
    _
  %s6 = ssub.s32 1, %s4
  %s7 = scalar_select 0, %s6, %s4
  %8 = sst [smem:[#allocation2]] %s0
  %9 = sst [smem:[#allocation3]] %s1
  $region1: #{tpu_custom_call.1} parent=0
    #allocation4 [shape = 'u8[2048]{0}', space=vmem, size = 0x800, scoped, tag = 'output window, operand 0, single buffered']
    #allocation5 [shape = 's32[1]{0}', space=sflag, size = 0x4, scoped, tag = 'scoped memory for tpu_custom_call.1']
    %10 = vsyncpa [#allocation5], 0
    // Predicated region
    $region2: #{tpu_custom_call.1} parent=1 // pred_check
      _
    $region3: #{tpu_custom_call.1} parent=1 // pred_check_branch
      %12 = sbr.rel (0) target = $region5
    $region4: #{tpu_custom_call.1} parent=1 // pred_region
      _
    $region5: #{tpu_custom_call.1} parent=1 // pred_fallthru
      _
    // Predicated region
    $region6: #{tpu_custom_call.1} parent=1 // pred_check
      _
    $region7: #{tpu_custom_call.1} parent=1 // pred_check_branch
      %14 = sbr.rel (0) target = $region9
    $region8: #{tpu_custom_call.1} parent=1 // pred_region
      _
    $region9: #{tpu_custom_call.1} parent=1 // pred_fallthru
      _
    // Predicated region
    $region10: #{tpu_custom_call.1} parent=1 // pred_check
      _
    $region11: #{tpu_custom_call.1} parent=1 // pred_check_branch
      %16 = sbr.rel (0) target = $region13
    $region12: #{tpu_custom_call.1} parent=1 // pred_region
      _
    $region13: #{tpu_custom_call.1} parent=1 // pred_fallthru
      _
    %v17 = vld [vmem:[%s2] sm:$0x7]
    %s18 = sld [smem:[#allocation2]]
    %s19 = smul.u32 0, 1640531527
    %s20 = sadd.s32 %s18, %s19
    %v21 = vlaneseq
    %v22 = vstv %s20
    %v23 = vxor.u32 %v22, %v22
    %v24 = vxor.u32 %v23, 466688986
    %v25 = vadd.s32 %v21, %v22
    %v26 = vadd.s32 %v25, %v25
    %v27 = vshll.u32 %v25, 13
    %v28 = vshrl.u32 %v25, 19
    %v29 = vor.u32 %v27, %v28
    %v30 = vxor.u32 %v26, %v29
    %v31 = vadd.s32 %v26, %v30
    %v32 = vshll.u32 %v30, 15
    %v33 = vshrl.u32 %v30, 17
    %v34 = vor.u32 %v32, %v33
    %v35 = vxor.u32 %v31, %v34
    %v36 = vadd.s32 %v31, %v35
    %v37 = vshll.u32 %v35, 26
    %v38 = vshrl.u32 %v35, 6
    %v39 = vor.u32 %v37, %v38
    %v40 = vxor.u32 %v36, %v39
    %v41 = vadd.s32 %v36, %v40
    %v42 = vshll.u32 %v40, 6
    %v43 = vshrl.u32 %v40, 26
    %v44 = vor.u32 %v42, %v43
    %v45 = vxor.u32 %v41, %v44
    %v46 = vadd.s32 %v41, %v22
    %v47 = vadd.s32 %v45, %v24
    %v48 = vadd.s32 %v47, 1
    %v49 = vadd.s32 %v46, %v48
    %v50 = vshll.u32 %v48, 17
    %v51 = vshrl.u32 %v48, 15
    %v52 = vor.u32 %v50, %v51
    %v53 = vxor.u32 %v49, %v52
    %v54 = vadd.s32 %v49, %v53
    %v55 = vshll.u32 %v53, 29
    %v56 = vshrl.u32 %v53, 3
    %v57 = vor.u32 %v55, %v56
    %v58 = vxor.u32 %v54, %v57
    %v59 = vadd.s32 %v54, %v58
    %v60 = vshll.u32 %v58, 16
    %v61 = vshrl.u32 %v58, 16
    %v62 = vor.u32 %v60, %v61
    %v63 = vxor.u32 %v59, %v62
    %v64 = vadd.s32 %v59, %v63
    %v65 = vshll.u32 %v63, 24
    %v66 = vshrl.u32 %v63, 8
    %v67 = vor.u32 %v65, %v66
    %v68 = vxor.u32 %v64, %v67
    %v69 = vadd.s32 %v64, %v24
    %v70 = vadd.s32 %v68, %v22
    %v71 = vadd.s32 %v70, 2
    %v72 = vadd.s32 %v69, %v71
    %v73 = vshll.u32 %v71, 13
    %v74 = vshrl.u32 %v71, 19
    %v75 = vor.u32 %v73, %v74
    %v76 = vxor.u32 %v72, %v75
    %v77 = vadd.s32 %v72, %v76
    %v78 = vshll.u32 %v76, 15
    %v79 = vshrl.u32 %v76, 17
    %v80 = vor.u32 %v78, %v79
    %v81 = vxor.u32 %v77, %v80
    %v82 = vadd.s32 %v77, %v81
    %v83 = vshll.u32 %v81, 26
    %v84 = vshrl.u32 %v81, 6
    %v85 = vor.u32 %v83, %v84
    %v86 = vxor.u32 %v82, %v85
    %v87 = vadd.s32 %v82, %v86
    %v88 = vshll.u32 %v86, 6
    %v89 = vshrl.u32 %v86, 26
    %v90 = vor.u32 %v88, %v89
    %v91 = vxor.u32 %v87, %v90
    %v92 = vadd.s32 %v87, %v22
    %v93 = vadd.s32 %v91, %v22
    %v94 = vadd.s32 %v93, 3
    %v95 = vadd.s32 %v92, %v94
    %v96 = vshll.u32 %v94, 17
    %v97 = vshrl.u32 %v94, 15
    %v98 = vor.u32 %v96, %v97
    %v99 = vxor.u32 %v95, %v98
    %v100 = vadd.s32 %v95, %v99
    %v101 = vshll.u32 %v99, 29
    %v102 = vshrl.u32 %v99, 3
    %v103 = vor.u32 %v101, %v102
    %v104 = vxor.u32 %v100, %v103
    %v105 = vadd.s32 %v100, %v104
    %v106 = vshll.u32 %v104, 16
    %v107 = vshrl.u32 %v104, 16
    %v108 = vor.u32 %v106, %v107
    %v109 = vxor.u32 %v105, %v108
    %v110 = vadd.s32 %v105, %v109
    %v111 = vshll.u32 %v109, 24
    %v112 = vshrl.u32 %v109, 8
    %v113 = vor.u32 %v111, %v112
    %v114 = vxor.u32 %v110, %v113
    %v115 = vadd.s32 %v110, %v22
    %v116 = vadd.s32 %v114, %v24
    %v117 = vadd.s32 %v116, 4
    %v118 = vadd.s32 %v115, %v117
    %v119 = vshll.u32 %v117, 13
    %v120 = vshrl.u32 %v117, 19
    %v121 = vor.u32 %v119, %v120
    %v122 = vxor.u32 %v118, %v121
    %v123 = vadd.s32 %v118, %v122
    %v124 = vshll.u32 %v122, 15
    %v125 = vshrl.u32 %v122, 17
    %v126 = vor.u32 %v124, %v125
    %v127 = vxor.u32 %v123, %v126
    %v128 = vadd.s32 %v123, %v127
    %v129 = vshll.u32 %v127, 26
    %v130 = vshrl.u32 %v127, 6
    %v131 = vor.u32 %v129, %v130
    %v132 = vxor.u32 %v128, %v131
    %v133 = vadd.s32 %v128, %v132
    %v134 = vshll.u32 %v132, 6
    %v135 = vshrl.u32 %v132, 26
    %v136 = vor.u32 %v134, %v135
    %v137 = vxor.u32 %v133, %v136
    %v138 = vadd.s32 %v133, %v24
    %v139 = vadd.s32 %v137, %v22
    %v140 = vadd.s32 %v139, 5
    %v141 = vxor.u32 %v138, %v140
    %142 = set.rngseed %v141
    %v143 = vrng
    %v144 = vshrl.u32 %v143, 9
    %v145 = vor.u32 %v144, 1065353216
    %v147 = vsub.f32 %v145, 1.0
    %v148 = vmul.f32 %v147, 2.0
    %v149 = vadd.f32 %v148, -0.99999994
    %v150 = vmax.f32 %v149, -0.99999994
    %v151 = vsub.f32 0.0, %v150
    %v152 = vmul.f32 %v150, %v151
    %v153 = vadd.f32 %v152, 1.0
    %v154 = vlog2.pop %v153
    %v155 = vmul.f32 %v154, 0.6931472
    %v156 = vmul.f32 -0.5, %v152
    %v157 = vadd.f32 %v156, 1.0
    %v158 = vmul.f32 %v157, %v152
    %v159 = vand.u32 2147483647, %v152
    %vm160 = vcmp.lt.f32.partialorder %v159, 0.0004427343
    %v161 = vsel %vm160, %v158, %v155
    %v162 = vsub.f32 0.0, %v161
    %vm163 = vcmp.lt.f32.partialorder %v162, 5.0
    %v164 = vsub.f32 %v162, 2.5
    %v165 = vrsqrt.pop %v162
    %v166 = vmul.f32 %v165, %v162
    %v167 = vmul.f32 %v166, %v165
    %v168 = vmul.f32 0.5, %v167
    %v169 = vsub.f32 1.5, %v168
    %v170 = vmul.f32 %v165, %v169
    %v171 = vmul.f32 %v162, %v170
    %vm172 = vcmp.eq.f32.partialorder %v162, inf
    %v173 = vsel %vm172, %v162, %v171
    %vm174 = vcmp.eq.f32.partialorder %v162, 0.0
    %v175 = vand.u32 %v162, 2147483648
    %v176 = vsel %vm174, %v175, %v173
    %v177 = vsub.f32 %v176, 3.0
    %v178 = vsel %vm163, %v164, %v177
    %v179 = vsel %vm163, 2.8102264e-08, -0.00020021426
    %v180 = vsel %vm163, 3.4327394e-07, 0.00010095056
    %v181 = vmul.f32 %v179, %v178
    %v182 = vadd.f32 %v180, %v181
    %v183 = vsel %vm163, -3.5233877e-06, 0.0013493432
    %v184 = vmul.f32 %v182, %v178
    %v185 = vadd.f32 %v183, %v184
    %v186 = vsel %vm163, -4.3915065e-06, -0.0036734284
    %v187 = vmul.f32 %v185, %v178
    %v188 = vadd.f32 %v186, %v187
    %v189 = vsel %vm163, 0.00021858087, 0.0057395077
    %v190 = vmul.f32 %v188, %v178
    %v191 = vadd.f32 %v189, %v190
    %v192 = vsel %vm163, -0.001253725, -0.0076224613
    %v193 = vmul.f32 %v191, %v178
    %v194 = vadd.f32 %v192, %v193
    %v195 = vsel %vm163, -0.0041776816, 0.0094388705
    %v196 = vmul.f32 %v194, %v178
    %v197 = vadd.f32 %v195, %v196
    %v198 = vsel %vm163, 0.24664073, 1.001674
    %v199 = vmul.f32 %v197, %v178
    %v200 = vadd.f32 %v198, %v199
    %v201 = vsel %vm163, 1.5014094, 2.8329768
    %v202 = vmul.f32 %v200, %v178
    %v203 = vadd.f32 %v201, %v202
    %v204 = vand.u32 2147483647, %v150
    %vm205 = vcmp.eq.f32.partialorder %v204, 1.0
    %v206 = vmul.f32 %v150, inf
    %v207 = vmul.f32 %v203, %v150
    %v208 = vsel %vm205, %v206, %v207
    %v209 = vmul.f32 %v208, 1.4142135
    %s210 = sld [smem:[#allocation3]]
    %v211 = vstv %s210
    %v212 = vmul.f32 %v211, %v209
    %v213 = vadd.f32 %v17, %v212
    %v214 = vmax.f32 %v213, 0.0
    %v215 = vmin.f32 %v214, 1.0
    %216 = vst [vmem:[#allocation4] sm:$0x7] %v215
    // Predicated region
    $region14: #{tpu_custom_call.1} parent=1 // pred_check
      _
    $region15: #{tpu_custom_call.1} parent=1 // pred_check_branch
      %218 = sbr.rel (0) target = $region17
    $region16: #{tpu_custom_call.1} parent=1 // pred_region
      %220 = vsyncadd [#allocation5], 0
      %s222 = sshll.u32 [#allocation4], 4
      %s223 = int_to_ptr.vmem [resolvable:$true] %s222
      %s224 = sshll.u32 %s3, 4
      %s225 = int_to_ptr.hbm [resolvable:$true] %s224
      %227 = dma.vmem_to_hbm [thread:$0]  %s223, 64, %s225, [#allocation5]
    $region17: #{tpu_custom_call.1} parent=1 // pred_fallthru
      _
    // Predicated region
    $region18: #{tpu_custom_call.1} parent=1 // pred_check
      _
    $region19: #{tpu_custom_call.1} parent=1 // pred_check_branch
      %229 = sbr.rel (0) target = $region21
    $region20: #{tpu_custom_call.1} parent=1 // pred_region
      %231 = dma.done [#allocation5], 64
    $region21: #{tpu_custom_call.1} parent=1 // pred_fallthru
      _
    %232 = vsyncpa [#allocation5], 1

// kernel: tpu_custom_call.1
$region0: #{tpu_custom_call.1}
  #allocation0 [shape = 'u32[]', space=smem, size = 0x4, offset = 0x4, fixed_abs, tag = 'smem constant byte address 0x4 - core index']
  #allocation1 [shape = 'u32[72,128]{1,0:T(1,128)}', space=vmem, size = 0x9000, scoped, tag = 'internal scratch']
  %s0 = inlined_call_operand.vmem [shape: f32[6,1], index: 0, kind: input, shape index: {}]
  %s1 = inlined_call_operand.vmem [shape: f32[6,1], index: 1, kind: input, shape index: {}]
  %s2 = inlined_call_operand.vmem [shape: f32[6,256], index: 2, kind: input, shape index: {}]
  %s3 = inlined_call_operand.hbm [shape: f32[6,256], index: 3, kind: input, shape index: {}]
  %s4 = inlined_call_operand.hbm [shape: f32[6,256], index: 4, kind: output, shape index: {}]
  %s5 = sld [smem:[#allocation0]]
  $region53: #{tpu_custom_call.1} parent=0
    _
  %s7 = ssub.s32 1, %s5
  %s8 = scalar_select 0, %s7, %s5
  $region1: #{tpu_custom_call.1} parent=0
    #allocation2 [shape = 'u8[8192]{0}', space=vmem, size = 0x2000, scoped, tag = 'input window, operand 3']
    #allocation3 [shape = 's32[2]{0}', space=sflag, size = 0x8, scoped, tag = 'scoped memory for tpu_custom_call.1']
    #allocation4 [shape = 's32[2]{0}', space=sflag, size = 0x8, scoped, tag = 'scoped memory for tpu_custom_call.1']
    #allocation5 [shape = 'u8[8192]{0}', space=vmem, size = 0x2000, scoped, tag = 'output window, operand 0']
    %9 = vsyncpa [#allocation3], 0
    %s10 = scalar_lea.sflag [#allocation3], 1
    %11 = vsyncpa %s10, 0
    %12 = vsyncpa [#allocation4], 0
    %s13 = scalar_lea.sflag [#allocation4], 1
    %14 = vsyncpa %s13, 0
    loop: start=0, step=1, limit=4
    $region2: #{tpu_custom_call.1} parent=1 // loop_pre_header
      _
    $region3: #{tpu_custom_call.1} parent=1 // loop_header
      %s16 = sphi 0, %s20
      %p17 = scmp.ge.s32.totalorder %s16, 4
      %s24 = sphi 0, %s24
      %s26 = sphi 0, %s24
      %s27 = sphi 0, %s26
      %s41 = sphi 0, %s27
      %s45 = sphi 0, %s45
      %s47 = sphi 0, %s45
      %s48 = sphi 0, %s47
      %s62 = sphi 0, %s48
      %s68 = sphi 0, %s70
      %s71 = sphi 0, %s68
      %s72 = sphi 0, %s71
      %s88 = sphi 0, %s72
      %s94 = sphi 0, %s96
      %s97 = sphi 0, %s94
      %s98 = sphi 0, %s97
      %s114 = sphi 0, %s98
      %s120 = sphi 0, %s122
      %s123 = sphi 0, %s120
      %s124 = sphi 0, %s123
      %s140 = sphi 0, %s124
    $region4: #{tpu_custom_call.1} parent=1 // loop_header_branch
      %19 = sbr.rel (%p17) target = $region8
    $region5: #{tpu_custom_call.1} parent=1 // loop_body
      %s21 = ssub.s32 %s16, 1
      %s22 = ssub.s32 %s16, 2
      %s23 = sadd.s32 %s16, 1
      %s25 = sadd.s32 %s24, 1
      %p28 = scmp.eq.s32.totalorder %s16, 1
      %p29 = scmp.ne.s32.totalorder %s24, %s26
      %p30 = scmp.eq.s32.totalorder %s16, 0
      %p31 = por %p29, %p30
      %p32 = scmp.ne.s32.totalorder %s24, %s26
      %p33 = scmp.eq.s32.totalorder %s21, 1
      %p34 = por %p32, %p33
      %p35 = scmp.ne.s32.totalorder %s26, %s27
      %p36 = scmp.eq.s32.totalorder %s21, 0
      %p37 = por %p35, %p36
      %p38 = scmp.ne.s32.totalorder %s26, %s27
      %p39 = scmp.eq.s32.totalorder %s22, 1
      %p40 = por %p38, %p39
      %p42 = scmp.ne.s32.totalorder %s27, %s41
      %p43 = scmp.eq.s32.totalorder %s22, 0
      %p44 = por %p42, %p43
      %s46 = sadd.s32 %s45, 1
      %p49 = scmp.eq.s32.totalorder %s16, 1
      %p50 = scmp.ne.s32.totalorder %s45, %s47
      %p51 = scmp.eq.s32.totalorder %s16, 0
      %p52 = por %p50, %p51
      %p53 = scmp.ne.s32.totalorder %s45, %s47
      %p54 = scmp.eq.s32.totalorder %s21, 1
      %p55 = por %p53, %p54
      %p56 = scmp.ne.s32.totalorder %s47, %s48
      %p57 = scmp.eq.s32.totalorder %s21, 0
      %p58 = por %p56, %p57
      %p59 = scmp.ne.s32.totalorder %s47, %s48
      %p60 = scmp.eq.s32.totalorder %s22, 1
      %p61 = por %p59, %p60
      %p63 = scmp.ne.s32.totalorder %s48, %s62
      %p64 = scmp.eq.s32.totalorder %s22, 0
      %p65 = por %p63, %p64
      %s66 = ssub.s32 %s16, %s23
      %p67 = scmp.eq.s32.totalorder %s66, 0
      %s69 = sadd.s32 %s68, 1
      %s70 = scalar_select %p67, %s68, %s69
      %p73 = pneg %p67
      %p74 = scmp.eq.s32.totalorder %s16, 1
      %p75 = por %p73, %p74
      %p76 = scmp.ne.s32.totalorder %s68, %s71
      %p77 = scmp.eq.s32.totalorder %s16, 0
      %p78 = por %p76, %p77
      %p79 = scmp.ne.s32.totalorder %s68, %s71
      %p80 = scmp.eq.s32.totalorder %s21, 1
      %p81 = por %p79, %p80
      %p82 = scmp.ne.s32.totalorder %s71, %s72
      %p83 = scmp.eq.s32.totalorder %s21, 0
      %p84 = por %p82, %p83
      %p85 = scmp.ne.s32.totalorder %s71, %s72
      %p86 = scmp.eq.s32.totalorder %s22, 1
      %p87 = por %p85, %p86
      %p89 = scmp.ne.s32.totalorder %s72, %s88
      %p90 = scmp.eq.s32.totalorder %s22, 0
      %p91 = por %p89, %p90
      %s92 = ssub.s32 %s16, %s23
      %p93 = scmp.eq.s32.totalorder %s92, 0
      %s95 = sadd.s32 %s94, 1
      %s96 = scalar_select %p93, %s94, %s95
      %p99 = pneg %p93
      %p100 = scmp.eq.s32.totalorder %s16, 1
      %p101 = por %p99, %p100
      %p102 = scmp.ne.s32.totalorder %s94, %s97
      %p103 = scmp.eq.s32.totalorder %s16, 0
      %p104 = por %p102, %p103
      %p105 = scmp.ne.s32.totalorder %s94, %s97
      %p106 = scmp.eq.s32.totalorder %s21, 1
      %p107 = por %p105, %p106
      %p108 = scmp.ne.s32.totalorder %s97, %s98
      %p109 = scmp.eq.s32.totalorder %s21, 0
      %p110 = por %p108, %p109
      %p111 = scmp.ne.s32.totalorder %s97, %s98
      %p112 = scmp.eq.s32.totalorder %s22, 1
      %p113 = por %p111, %p112
      %p115 = scmp.ne.s32.totalorder %s98, %s114
      %p116 = scmp.eq.s32.totalorder %s22, 0
      %p117 = por %p115, %p116
      %s118 = ssub.s32 %s16, %s23
      %p119 = scmp.eq.s32.totalorder %s118, 0
      %s121 = sadd.s32 %s120, 1
      %s122 = scalar_select %p119, %s120, %s121
      %p125 = pneg %p119
      %p126 = scmp.eq.s32.totalorder %s16, 1
      %p127 = por %p125, %p126
      %p128 = scmp.ne.s32.totalorder %s120, %s123
      %p129 = scmp.eq.s32.totalorder %s16, 0
      %p130 = por %p128, %p129
      %p131 = scmp.ne.s32.totalorder %s120, %s123
      %p132 = scmp.eq.s32.totalorder %s21, 1
      %p133 = por %p131, %p132
      %p134 = scmp.ne.s32.totalorder %s123, %s124
      %p135 = scmp.eq.s32.totalorder %s21, 0
      %p136 = por %p134, %p135
      %p137 = scmp.ne.s32.totalorder %s123, %s124
      %p138 = scmp.eq.s32.totalorder %s22, 1
      %p139 = por %p137, %p138
      %p141 = scmp.ne.s32.totalorder %s124, %s140
      %p142 = scmp.eq.s32.totalorder %s22, 0
      %p143 = por %p141, %p142
      %p144 = scmp.le.s32.totalorder 1, %s16
      %p145 = scmp.lt.s32.totalorder %s16, 3
      %p146 = pnand %p144, %p145
      %p147 = pneg %p146
      // Predicated region
      $region9: #{tpu_custom_call.1} parent=5 // pred_check
        _
      $region10: #{tpu_custom_call.1} parent=5 // pred_check_branch
        %149 = sbr.rel (%p146) target = $region12
      $region11: #{tpu_custom_call.1} parent=5 // pred_region
        %s150 = ssub.s32 %s16, 1
        // Predicated region
        $region13: #{tpu_custom_call.1} parent=11 // pred_check
          %p151 = pneg %p37
        $region14: #{tpu_custom_call.1} parent=11 // pred_check_branch
          %153 = sbr.rel (%p151) target = $region16
        $region15: #{tpu_custom_call.1} parent=11 // pred_region
          _
        $region16: #{tpu_custom_call.1} parent=11 // pred_fallthru
          _
        // Predicated region
        $region17: #{tpu_custom_call.1} parent=11 // pred_check
          %p154 = pneg %p58
        $region18: #{tpu_custom_call.1} parent=11 // pred_check_branch
          %156 = sbr.rel (%p154) target = $region20
        $region19: #{tpu_custom_call.1} parent=11 // pred_region
          _
        $region20: #{tpu_custom_call.1} parent=11 // pred_fallthru
          _
      $region12: #{tpu_custom_call.1} parent=5 // pred_fallthru
        _
      %p157 = scmp.lt.s32.totalorder %s16, 2
      // Predicated region
      $region21: #{tpu_custom_call.1} parent=5 // pred_check
        %p158 = pneg %p157
      $region22: #{tpu_custom_call.1} parent=5 // pred_check_branch
        %160 = sbr.rel (%p158) target = $region24
      $region23: #{tpu_custom_call.1} parent=5 // pred_region
        // Predicated region
        $region25: #{tpu_custom_call.1} parent=23 // pred_check
          %p161 = pneg %p78
        $region26: #{tpu_custom_call.1} parent=23 // pred_check_branch
          %163 = sbr.rel (%p161) target = $region28
        $region27: #{tpu_custom_call.1} parent=23 // pred_region
          %p164 = scmp.lt.s32.totalorder %s16, 1
          %s165 = scalar_select %p164, %s16, 1
          %s166 = smul.addr %s165, 8
          %s167 = scalar_lea.vmem %s2, %s166
        $region28: #{tpu_custom_call.1} parent=23 // pred_fallthru
          _
        // Predicated region
        $region29: #{tpu_custom_call.1} parent=23 // pred_check
          %p168 = pneg %p104
        $region30: #{tpu_custom_call.1} parent=23 // pred_check_branch
          %170 = sbr.rel (%p168) target = $region32
        $region31: #{tpu_custom_call.1} parent=23 // pred_region
          %s171 = sand.u32 %s94, 1
          %s172 = scalar_lea.sflag [#allocation3], %s171
          %s173 = sand.u32 %s94, 1
          %s174 = smul.addr %s173, 8
          %s175 = scalar_lea.vmem [#allocation2], %s174
          %177 = vsyncadd %s172, 0
          %s178 = smul.addr %s16, 8
          %s179 = scalar_lea.hbm %s3, %s178
          %s181 = sshll.u32 %s179, 4
          %s182 = int_to_ptr.hbm [resolvable:$true] %s181
          %s183 = sshll.u32 %s175, 4
          %s184 = int_to_ptr.vmem [resolvable:$true] %s183
          %186 = dma.hbm_to_vmem [thread:$0]  %s182, 128, %s184, %s172
        $region32: #{tpu_custom_call.1} parent=23 // pred_fallthru
          _
      $region24: #{tpu_custom_call.1} parent=5 // pred_fallthru
        _
      %p187 = scmp.le.s32.totalorder 1, %s16
      %p188 = scmp.lt.s32.totalorder %s16, 3
      %p189 = pnand %p187, %p188
      %p190 = pneg %p189
      // Predicated region
      $region33: #{tpu_custom_call.1} parent=5 // pred_check
        _
      $region34: #{tpu_custom_call.1} parent=5 // pred_check_branch
        %192 = sbr.rel (%p189) target = $region36
      $region35: #{tpu_custom_call.1} parent=5 // pred_region
        %s193 = ssub.s32 %s16, 1
        %s194 = sand.u32 %s97, 1
        %s195 = scalar_lea.sflag [#allocation3], %s194
        %s196 = sand.u32 %s97, 1
        %s197 = smul.addr %s196, 8
        %s198 = scalar_lea.vmem [#allocation2], %s197
        // Predicated region
        $region37: #{tpu_custom_call.1} parent=35 // pred_check
          %p199 = pneg %p110
        $region38: #{tpu_custom_call.1} parent=35 // pred_check_branch
          %201 = sbr.rel (%p199) target = $region40
        $region39: #{tpu_custom_call.1} parent=35 // pred_region
          %203 = dma.done %s195, 128
        $region40: #{tpu_custom_call.1} parent=35 // pred_fallthru
          _
        %p204 = pneg %p37
        %p205 = pneg %p34
        %p206 = pneg %p58
        %p207 = pneg %p55
        %p208 = scmp.lt.s32.totalorder %s21, 1
        %s209 = scalar_select %p208, %s21, 1
        %s210 = smul.addr %s209, 8
        %s211 = scalar_lea.vmem %s2, %s210
        %p212 = pneg %p84
        %p213 = pneg %p81
        %s214 = sand.u32 %s97, 1
        %s215 = scalar_lea.sflag [#allocation3], %s214
        %s216 = sand.u32 %s97, 1
        %s217 = smul.addr %s216, 8
        %s218 = scalar_lea.vmem [#allocation2], %s217
        %p219 = pneg %p110
        %p220 = pneg %p107
        %p221 = pneg %p136
        %p222 = pneg %p133
        %s223 = sand.u32 %s123, 1
        %s224 = scalar_lea.sflag [#allocation4], %s223
        %s225 = sand.u32 %s123, 1
        %s226 = smul.addr %s225, 8
        %s227 = scalar_lea.vmem [#allocation5], %s226
        %p228 = scmp.lt.s32.totalorder %s21, 1
        %s229 = scalar_select %p228, %s21, 1
        %s230 = smul.addr %s229, 8
        %s231 = scalar_lea.vmem %s2, %s230
        %v232 = vld [vmem:[%s198] sm:$0x3f]
        %v233 = vld [vmem:[%s0] sm:$0x3f]
        %235 = vset.pattern.permute.xlu0 0
        %236 = vperm.xlu0 %235, %v233
        %v237 = vpop.permute.xlu0 %236
        %v239 = vmul.f32 %v232, %v237
        %v240 = vld [vmem:[%s1] sm:$0x3f]
        %242 = vset.pattern.permute.xlu0 0
        %243 = vperm.xlu0 %242, %v240
        %v244 = vpop.permute.xlu0 %243
        %v246 = vadd.f32 %v239, %v244
        %v247 = vmax.f32 %v246, 0.0
        %v248 = vmin.f32 %v247, 1.0
        %v249 = vld [vmem:[%s231] sm:$0x3f]
        %v250 = vadd.f32 %v248, %v249
        %v251 = vmax.f32 %v250, 0.0
        %v252 = vmin.f32 %v251, 1.0
        %253 = vst [vmem:[%s227] sm:$0x3f] %v252
        %s254 = sand.u32 %s123, 1
        %s255 = scalar_lea.sflag [#allocation4], %s254
        %s256 = sand.u32 %s123, 1
        %s257 = smul.addr %s256, 8
        %s258 = scalar_lea.vmem [#allocation5], %s257
        // Predicated region
        $region41: #{tpu_custom_call.1} parent=35 // pred_check
          %p259 = pneg %p133
        $region42: #{tpu_custom_call.1} parent=35 // pred_check_branch
          %261 = sbr.rel (%p259) target = $region44
        $region43: #{tpu_custom_call.1} parent=35 // pred_region
          %263 = vsyncadd %s255, 0
          %s264 = smul.addr %s21, 8
          %s265 = scalar_lea.hbm %s4, %s264
          %s267 = sshll.u32 %s258, 4
          %s268 = int_to_ptr.vmem [resolvable:$true] %s267
          %s269 = sshll.u32 %s265, 4
          %s270 = int_to_ptr.hbm [resolvable:$true] %s269
          %272 = dma.vmem_to_hbm [thread:$0]  %s268, 128, %s270, %s255
        $region44: #{tpu_custom_call.1} parent=35 // pred_fallthru
          _
      $region36: #{tpu_custom_call.1} parent=5 // pred_fallthru
        _
      %p273 = scmp.le.s32.totalorder 2, %s16
      // Predicated region
      $region45: #{tpu_custom_call.1} parent=5 // pred_check
        %p274 = pneg %p273
      $region46: #{tpu_custom_call.1} parent=5 // pred_check_branch
        %276 = sbr.rel (%p274) target = $region48
      $region47: #{tpu_custom_call.1} parent=5 // pred_region
        %s277 = ssub.s32 %s16, 2
        // Predicated region
        $region49: #{tpu_custom_call.1} parent=47 // pred_check
          %p278 = pneg %p139
        $region50: #{tpu_custom_call.1} parent=47 // pred_check_branch
          %280 = sbr.rel (%p278) target = $region52
        $region51: #{tpu_custom_call.1} parent=47 // pred_region
          %s281 = sand.u32 %s124, 1
          %s282 = scalar_lea.sflag [#allocation4], %s281
          %s283 = sand.u32 %s124, 1
          %s284 = smul.addr %s283, 8
          %s285 = scalar_lea.vmem [#allocation5], %s284
          %287 = dma.done %s282, 128
        $region52: #{tpu_custom_call.1} parent=47 // pred_fallthru
          _
      $region48: #{tpu_custom_call.1} parent=5 // pred_fallthru
        _
    $region6: #{tpu_custom_call.1} parent=1 // loop_footer
      %s20 = sadd.s32 1, %s16
    $region7: #{tpu_custom_call.1} parent=1 // loop_footer_branch
      %15 = sbr.rel target = $region3
    $region8: #{tpu_custom_call.1} parent=1 // loop_exit
      _
    %288 = vsyncpa [#allocation3], 1
    %s289 = scalar_lea.sflag [#allocation3], 1
    %290 = vsyncpa %s289, 1
    %291 = vsyncpa [#allocation4], 1
    %s292 = scalar_lea.sflag [#allocation4], 1
    %293 = vsyncpa %s292, 1

</llo_original>
